<compile_context>
chip_gen: v5e
topology: v5e:2x2
jax: 0.10.0
libtpu: 0.0.40
codegen_flags: <defaults>
</compile_context>

<pallas_src>
import jax
import jax.numpy as jnp
from jax import lax
from jax.experimental import pallas as pl
from jax.experimental.pallas import tpu as pltpu


def _temporal_attention_kernel(xf_ref, w_cat_ref, be_ref, ve_ref, out_ref):
    """Per grid step:
        xf_ref   : (bb*T, F*N)  batch-stacked, time-major input
        w_cat_ref: (F*N, 2N)    [U1*U2 projection | U3 contraction] fused
        be_ref   : (T, T)
        ve_ref   : (T, T)
        out_ref  : (bb, T, T)
    """
    bb, t, _ = out_ref.shape
    n = w_cat_ref.shape[1] // 2

    xf = xf_ref[...]                                   # (bb*T, F*N)
    w_cat = w_cat_ref[...]                             # (F*N, 2N)
    be = be_ref[...]                                   # (T, T)
    ve = ve_ref[...]                                   # (T, T)

    # Both contractions for ALL batches in a single MXU matmul:
    #   proj[b*T+t, m]      = sum_{f,n'} x[b,n',f,t] * U1[n'] * U2[f,m]
    #   proj[b*T+t, N + n]  = sum_f      x[b,n,f,t]  * U3[f]
    proj = jnp.dot(xf, w_cat, preferred_element_type=jnp.float32)   # (bb*T, 2N)
    lhs_all = proj[:, :n]                              # (bb*T, N)
    rhs_all = proj[:, n:]                              # (bb*T, N) == rhs[b].T rows

    # All per-batch products in ONE MXU push:
    #   full[b*T+t, b'*T+s] = sum_n lhs_all[b*T+t, n] * rhs_all[b'*T+s, n]
    # Only the diagonal (b == b') blocks are used; the cross-batch waste is
    # negligible at bb <= 8 (switch to a batched einsum if bb ever grows).
    full = lax.dot_general(lhs_all, rhs_all, (((1,), (1,)), ((), ())),
                           preferred_element_type=jnp.float32)      # (bb*T, bb*T)

    # Lane-stack the per-batch product blocks -> (T, bb*T) so the sigmoid,
    # the Ve matmul and the column-wise softmax are each done ONCE.
    blocks = [full[b * t:(b + 1) * t, b * t:(b + 1) * t] + be for b in range(bb)]
    prod = blocks[0] if bb == 1 else jnp.concatenate(blocks, axis=1)  # (T, bb*T)

    # Exact sigmoid (exact divide; exp underflow to 0 for very negative inputs
    # matches the mathematical limit).
    sig = 1.0 / (1.0 + jnp.exp(-prod))                               # (T, bb*T)

    e = jnp.dot(ve, sig, preferred_element_type=jnp.float32)         # (T, bb*T)

    # softmax over dim=1 of (B, T, T) == column-wise (axis 0) softmax here.
    m = jnp.max(e, axis=0, keepdims=True)
    ex = jnp.exp(e - m)
    denom = jnp.sum(ex, axis=0, keepdims=True)
    out = ex / denom                                   # exact normalization (rows sum to 1)

    # Static per-batch stores: no concatenate / intermediate buffer.
    for b in range(bb):
        out_ref[b] = out[:, b * t:(b + 1) * t].astype(out_ref.dtype)


def temporal_attention(x, u1, u2, u3, be, ve, *, batch_block=None):
    """x: (B, N, F, T) float32 -> (B, T, T) float32."""
    B, N, F, T = x.shape
    if batch_block is None:
        # One grid step: at bb*T = B*T (= 16 here) rows, splitting the grid
        # (even across v7x's 2 TensorCores) only adds per-step overhead.
        batch_block = B
    assert B % batch_block == 0
    bb = batch_block
    num_blocks = B // bb

    # Layout prep + tiny parameter fusion (pure JAX, negligible at this scale):
    #   xflat[b*T + t, f*N + n] = x[b, n, f, t]
    xflat = x.transpose(0, 3, 2, 1).reshape(B * T, F * N)
    # W_lhs[(f,n), m] = U1[n] * U2[f, m]
    w_lhs = (u1[None, :, None] * u2[:, None, :]).reshape(F * N, N)
    # W_rhs[(f,n), m] = U3[f] * delta(n, m)  ->  xflat @ W_rhs == U3 contraction
    w_rhs = (u3[:, None, None] * jnp.eye(N, dtype=x.dtype)[None]).reshape(F * N, N)
    w_cat = jnp.concatenate([w_lhs, w_rhs], axis=1)    # (F*N, 2N)
    be2 = be.reshape(T, T)

    grid_spec = pltpu.PrefetchScalarGridSpec(
        num_scalar_prefetch=0,
        grid=(num_blocks,),
        in_specs=[
            pl.BlockSpec((bb * T, F * N), lambda i: (i, 0)),   # xflat
            pl.BlockSpec((F * N, 2 * N), lambda i: (0, 0)),    # fused weight
            pl.BlockSpec((T, T), lambda i: (0, 0)),            # be
            pl.BlockSpec((T, T), lambda i: (0, 0)),            # Ve
        ],
        out_specs=pl.BlockSpec((bb, T, T), lambda i: (i, 0, 0)),
    )
    return pl.pallas_call(
        _temporal_attention_kernel,
        out_shape=jax.ShapeDtypeStruct((B, T, T), jnp.float32),
        grid_spec=grid_spec,
        compiler_params=pltpu.CompilerParams(
            dimension_semantics=("parallel",)),
    )(xflat, w_cat, be2, ve)


def temporal_attention_ref(x, u1, u2, u3, be, ve):
    """Pure-JAX reference mirroring the PyTorch forward."""
    lhs = jnp.einsum("btfn,n->btf", x.transpose(0, 3, 2, 1), u1)
    lhs = jnp.einsum("btf,fm->btm", lhs, u2)          # (B, T, N)
    rhs = jnp.einsum("f,bnft->bnt", u3, x)            # (B, N, T)
    product = jnp.einsum("btn,bns->bts", lhs, rhs)    # (B, T, T)
    e = jnp.einsum("ij,bjk->bik", ve, jax.nn.sigmoid(product + be))
    return jax.nn.softmax(e, axis=1)


if __name__ == "__main__":
    # Shapes consistent with the module: B=2, N(vertices)=16, F(channels)=4,
    # T(timesteps)=8.
    B, N, F, T = 2, 16, 4, 8
    key = jax.random.PRNGKey(0)
    kx, k1, k2, k3, kb, kv = jax.random.split(key, 6)

    x = jax.random.normal(kx, (B, N, F, T), dtype=jnp.float32)
    u1 = jax.random.normal(k1, (N,), dtype=jnp.float32)
    u2 = jax.random.normal(k2, (F, N), dtype=jnp.float32)
    u3 = jax.random.normal(k3, (F,), dtype=jnp.float32)
    be = jax.random.normal(kb, (1, T, T), dtype=jnp.float32)
    ve = jax.random.normal(kv, (T, T), dtype=jnp.float32)

    out = jax.block_until_ready(temporal_attention(x, u1, u2, u3, be, ve))
    ref = temporal_attention_ref(x, u1, u2, u3, be, ve)

    assert out.shape == (B, T, T)
    err = float(jnp.max(jnp.abs(out - ref)))
    # Exact divides everywhere -> only f32 reassociation noise (~1e-5) remains.
    assert jnp.allclose(out, ref, atol=1e-3, rtol=1e-3), err
    print("KERNEL_OK")
</pallas_src>

<mosaic_0001>
module attributes {stable_mosaic.version = 11 : i64} {
  func.func @_temporal_attention_kernel(%arg0: i32, %arg1: memref<16x64xf32, #tpu.memory_space<vmem>>, %arg2: memref<64x32xf32, #tpu.memory_space<vmem>>, %arg3: memref<8x8xf32, #tpu.memory_space<vmem>>, %arg4: memref<8x8xf32, #tpu.memory_space<vmem>>, %arg5: memref<2x8x8xf32, #tpu.memory_space<vmem>>) attributes {dimension_semantics = [#tpu.dimension_semantics<parallel>], iteration_bounds = array<i64: 1>, scalar_prefetch = 0 : i64, scratch_operands = 0 : i64, tpu.core_type = #tpu.core_type<tc>, window_params = [{transform_indices = @transform_0, window_bounds = array<i64: 16, 64>}, {pipeline_mode = #tpu.pipeline_mode<synchronous>, transform_indices = @transform_1, window_bounds = array<i64: 64, 32>}, {pipeline_mode = #tpu.pipeline_mode<synchronous>, transform_indices = @transform_2, window_bounds = array<i64: 8, 8>}, {pipeline_mode = #tpu.pipeline_mode<synchronous>, transform_indices = @transform_3, window_bounds = array<i64: 8, 8>}, {transform_indices = @transform_4, window_bounds = array<i64: 2, 8, 8>}]} {
    %c0 = arith.constant 0 : index
    %c0_0 = arith.constant 0 : index
    %0 = vector.load %arg1[%c0, %c0_0] : memref<16x64xf32, #tpu.memory_space<vmem>>, vector<16x64xf32>
    %c0_1 = arith.constant 0 : index
    %c0_2 = arith.constant 0 : index
    %1 = vector.load %arg2[%c0_1, %c0_2] : memref<64x32xf32, #tpu.memory_space<vmem>>, vector<64x32xf32>
    %c0_3 = arith.constant 0 : index
    %c0_4 = arith.constant 0 : index
    %2 = vector.load %arg3[%c0_3, %c0_4] : memref<8x8xf32, #tpu.memory_space<vmem>>, vector<8x8xf32>
    %c0_5 = arith.constant 0 : index
    %c0_6 = arith.constant 0 : index
    %3 = vector.load %arg4[%c0_5, %c0_6] : memref<8x8xf32, #tpu.memory_space<vmem>>, vector<8x8xf32>
    %cst = arith.constant dense<0.000000e+00> : vector<16x32xf32>
    %4 = tpu.matmul %0, %1, %cst {dimension_numbers = #tpu.dot_dimension_numbers<[1], [0], [0], [1], [0, 0, 1, 1], [], []>} : vector<16x64xf32>, vector<64x32xf32>, vector<16x32xf32> -> vector<16x32xf32>
    %5 = vector.extract_strided_slice %4 {offsets = [0, 0], sizes = [16, 16], strides = [1, 1]} : vector<16x32xf32> to vector<16x16xf32>
    %6 = vector.extract_strided_slice %4 {offsets = [0, 16], sizes = [16, 16], strides = [1, 1]} : vector<16x32xf32> to vector<16x16xf32>
    %cst_7 = arith.constant dense<0.000000e+00> : vector<16x16xf32>
    %7 = tpu.matmul %5, %6, %cst_7 {dimension_numbers = #tpu.dot_dimension_numbers<[1], [1], [0], [0], [0, 0, 1, 0], [], []>} : vector<16x16xf32>, vector<16x16xf32>, vector<16x16xf32> -> vector<16x16xf32>
    %8 = vector.extract_strided_slice %7 {offsets = [0, 0], sizes = [8, 8], strides = [1, 1]} : vector<16x16xf32> to vector<8x8xf32>
    %9 = arith.addf %8, %2 : vector<8x8xf32>
    %10 = vector.extract_strided_slice %7 {offsets = [8, 8], sizes = [8, 8], strides = [1, 1]} : vector<16x16xf32> to vector<8x8xf32>
    %11 = arith.addf %10, %2 : vector<8x8xf32>
    %12 = tpu.concatenate %9, %11 in 1 : vector<8x8xf32>, vector<8x8xf32> -> vector<8x16xf32>
    %cst_8 = arith.constant 0.000000e+00 : f32
    %13 = vector.broadcast %cst_8 : f32 to vector<8x16xf32>
    %14 = arith.subf %13, %12 : vector<8x16xf32>
    %15 = math.exp %14 : vector<8x16xf32>
    %cst_9 = arith.constant 1.000000e+00 : f32
    %16 = vector.broadcast %cst_9 : f32 to vector<8x16xf32>
    %17 = arith.addf %16, %15 : vector<8x16xf32>
    %cst_10 = arith.constant 1.000000e+00 : f32
    %18 = vector.broadcast %cst_10 : f32 to vector<8x16xf32>
    %19 = arith.divf %18, %17 : vector<8x16xf32>
    %cst_11 = arith.constant dense<0.000000e+00> : vector<8x16xf32>
    %20 = tpu.matmul %3, %19, %cst_11 {dimension_numbers = #tpu.dot_dimension_numbers<[1], [0], [0], [1], [0, 0, 1, 1], [], []>} : vector<8x8xf32>, vector<8x16xf32>, vector<8x16xf32> -> vector<8x16xf32>
    %cst_12 = arith.constant dense<0xFF800000> : vector<16xf32>
    %21 = vector.multi_reduction <maximumf>, %20, %cst_12 [0] : vector<8x16xf32> to vector<16xf32>
    %22 = vector.shape_cast %21 : vector<16xf32> to vector<1x16xf32>
    %23 = vector.broadcast %22 : vector<1x16xf32> to vector<8x16xf32>
    %24 = arith.subf %20, %23 : vector<8x16xf32>
    %25 = math.exp %24 : vector<8x16xf32>
    %cst_13 = arith.constant dense<0.000000e+00> : vector<16xf32>
    %26 = vector.multi_reduction <add>, %25, %cst_13 [0] : vector<8x16xf32> to vector<16xf32>
    %27 = vector.shape_cast %26 : vector<16xf32> to vector<1x16xf32>
    %28 = vector.broadcast %27 : vector<1x16xf32> to vector<8x16xf32>
    %29 = arith.divf %25, %28 : vector<8x16xf32>
    %30 = vector.extract_strided_slice %29 {offsets = [0, 0], sizes = [8, 8], strides = [1, 1]} : vector<8x16xf32> to vector<8x8xf32>
    %c0_14 = arith.constant 0 : index
    %c0_15 = arith.constant 0 : index
    %c0_16 = arith.constant 0 : index
    %31 = vector.load %arg5[%c0_14, %c0_15, %c0_16] : memref<2x8x8xf32, #tpu.memory_space<vmem>>, vector<1x8x8xf32>
    %32 = vector.shape_cast %31 : vector<1x8x8xf32> to vector<8x8xf32>
    %33 = vector.shape_cast %30 : vector<8x8xf32> to vector<1x8x8xf32>
    tpu.vector_store %arg5[%c0_14, %c0_15, %c0_16], %33 {strides = array<i32>} : memref<2x8x8xf32, #tpu.memory_space<vmem>>, vector<1x8x8xf32>,
    %34 = vector.extract_strided_slice %29 {offsets = [0, 8], sizes = [8, 8], strides = [1, 1]} : vector<8x16xf32> to vector<8x8xf32>
    %c1 = arith.constant 1 : index
    %c0_17 = arith.constant 0 : index
    %c0_18 = arith.constant 0 : index
    %35 = vector.load %arg5[%c1, %c0_17, %c0_18] : memref<2x8x8xf32, #tpu.memory_space<vmem>>, vector<1x8x8xf32>
    %36 = vector.shape_cast %35 : vector<1x8x8xf32> to vector<8x8xf32>
    %37 = vector.shape_cast %34 : vector<8x8xf32> to vector<1x8x8xf32>
    tpu.vector_store %arg5[%c1, %c0_17, %c0_18], %37 {strides = array<i32>} : memref<2x8x8xf32, #tpu.memory_space<vmem>>, vector<1x8x8xf32>,
    return
  }
  func.func @transform_0(%arg0: i32) -> (i32, i32) {
    %c0_i32 = arith.constant 0 : i32
    %c0_i32_0 = arith.constant 0 : i32
    return %arg0, %c0_i32 : i32, i32
  }
  func.func @transform_1(%arg0: i32) -> (i32, i32) {
    %c0_i32 = arith.constant 0 : i32
    %c0_i32_0 = arith.constant 0 : i32
    %c0_i32_1 = arith.constant 0 : i32
    return %c0_i32, %c0_i32_0 : i32, i32
  }
  func.func @transform_2(%arg0: i32) -> (i32, i32) {
    %c0_i32 = arith.constant 0 : i32
    %c0_i32_0 = arith.constant 0 : i32
    %c0_i32_1 = arith.constant 0 : i32
    return %c0_i32, %c0_i32_0 : i32, i32
  }
  func.func @transform_3(%arg0: i32) -> (i32, i32) {
    %c0_i32 = arith.constant 0 : i32
    %c0_i32_0 = arith.constant 0 : i32
    %c0_i32_1 = arith.constant 0 : i32
    return %c0_i32, %c0_i32_0 : i32, i32
  }
  func.func @transform_4(%arg0: i32) -> (i32, i32, i32) {
    %c0_i32 = arith.constant 0 : i32
    %c0_i32_0 = arith.constant 0 : i32
    %c0_i32_1 = arith.constant 0 : i32
    return %arg0, %c0_i32, %c0_i32_0 : i32, i32, i32
  }
}

</mosaic_0001>

<llo_original>
// kernel: tpu_custom_call.1
$region0: #{tpu_custom_call.1}
  #allocation0 [shape = 'u32[]', space=smem, size = 0x4, offset = 0x4, fixed_abs, tag = 'smem constant byte address 0x4 - core index']
  #allocation1 [shape = 'u32[72,128]{1,0:T(1,128)}', space=vmem, size = 0x9000, scoped, tag = 'internal scratch']
  %s0 = inlined_call_operand.vmem [shape: f32[16,64], index: 0, kind: input, shape index: {}]
  %s1 = inlined_call_operand.vmem [shape: f32[64,32], index: 1, kind: input, shape index: {}]
  %s2 = inlined_call_operand.vmem [shape: f32[8,8], index: 2, kind: input, shape index: {}]
  %s3 = inlined_call_operand.vmem [shape: f32[8,8], index: 3, kind: input, shape index: {}]
  %s4 = inlined_call_operand.hbm [shape: f32[2,8,8], index: 4, kind: output, shape index: {}]
  %s5 = sld [smem:[#allocation0]]
  $region26: #{tpu_custom_call.1} parent=0
    _
  %s7 = ssub.s32 1, %s5
  %s8 = scalar_select 0, %s7, %s5
  $region1: #{tpu_custom_call.1} parent=0
    #allocation2 [shape = 'u8[8192]{0}', space=vmem, size = 0x2000, scoped, tag = 'output window, operand 0, single buffered']
    #allocation3 [shape = 's32[1]{0}', space=sflag, size = 0x4, scoped, tag = 'scoped memory for tpu_custom_call.1']
    %9 = vsyncpa [#allocation3], 0
    // Predicated region
    $region2: #{tpu_custom_call.1} parent=1 // pred_check
      _
    $region3: #{tpu_custom_call.1} parent=1 // pred_check_branch
      %11 = sbr.rel (0) target = $region5
    $region4: #{tpu_custom_call.1} parent=1 // pred_region
      _
    $region5: #{tpu_custom_call.1} parent=1 // pred_fallthru
      _
    // Predicated region
    $region6: #{tpu_custom_call.1} parent=1 // pred_check
      _
    $region7: #{tpu_custom_call.1} parent=1 // pred_check_branch
      %13 = sbr.rel (0) target = $region9
    $region8: #{tpu_custom_call.1} parent=1 // pred_region
      _
    $region9: #{tpu_custom_call.1} parent=1 // pred_fallthru
      _
    // Predicated region
    $region10: #{tpu_custom_call.1} parent=1 // pred_check
      _
    $region11: #{tpu_custom_call.1} parent=1 // pred_check_branch
      %15 = sbr.rel (0) target = $region13
    $region12: #{tpu_custom_call.1} parent=1 // pred_region
      _
    $region13: #{tpu_custom_call.1} parent=1 // pred_fallthru
      _
    // Predicated region
    $region14: #{tpu_custom_call.1} parent=1 // pred_check
      _
    $region15: #{tpu_custom_call.1} parent=1 // pred_check_branch
      %17 = sbr.rel (0) target = $region17
    $region16: #{tpu_custom_call.1} parent=1 // pred_region
      _
    $region17: #{tpu_custom_call.1} parent=1 // pred_fallthru
      _
    %v18 = vld [vmem:[%s0] sm:$0xff]
    %v19 = vld [vmem:[%s0 + $0x8] sm:$0xff]
    %v20 = vld [vmem:[%s1] sm:$0xff]
    %v21 = vld [vmem:[%s1 + $0x8] sm:$0xff]
    %v22 = vld [vmem:[%s1 + $0x10] sm:$0xff]
    %v23 = vld [vmem:[%s1 + $0x18] sm:$0xff]
    %v24 = vld [vmem:[%s1 + $0x20] sm:$0xff]
    %v25 = vld [vmem:[%s1 + $0x28] sm:$0xff]
    %v26 = vld [vmem:[%s1 + $0x30] sm:$0xff]
    %v27 = vld [vmem:[%s1 + $0x38] sm:$0xff]
    %v28 = vld [vmem:[%s2] sm:$0xff]
    %v29 = vld [vmem:[%s3] sm:$0xff]
    %vm30 = vcmask 523264
    %v32 = vsel %vm30, %v18, 0
    %v35 = vsel %vm30, %v19, 0
    %37 = vmatpush.msra.mxu0 0.0
    %38 = vmatpush.msra.mxu0 0.0
    %39 = vmatpush.msra.mxu0 0.0
    %40 = vmatpush.msra.mxu0 0.0
    %41 = vmatpush.msra.mxu0 0.0
    %42 = vmatpush.msra.mxu0 0.0
    %43 = vmatpush.msra.mxu0 0.0
    %44 = vmatpush.msra.mxu0 0.0
    %45 = vmatpush.msra.mxu0 %v27
    %46 = vmatpush.msra.mxu0 %v26
    %47 = vmatpush.msra.mxu0 %v25
    %48 = vmatpush.msra.mxu0 %v24
    %49 = vmatpush.msra.mxu0 %v23
    %50 = vmatpush.msra.mxu0 %v22
    %51 = vmatpush.msra.mxu0 %v21
    %52 = vmatpush.msra.mxu0 %v20
    %53 = vmatmul.f32.gmra.mxu0 %v32
    %v54 = vpop.f32.mrf.mxu0
    %v55 = vadd.f32 0.0, %v54
    %56 = vmatmul.f32.gmra.mxu0 %v35
    %v57 = vpop.f32.mrf.mxu0
    %v58 = vadd.f32 0.0, %v57
    %59 = vdwg.mxu0
    %62 = vrot.lane.b32.xlu0 %v55, 112
    %v63 = vpop.permute.xlu0 %62
    %64 = vrot.lane.b32.xlu0 %v58, 112
    %v65 = vpop.permute.xlu0 %64
    %vm66 = vcmask 130048
    %v67 = vsel %vm66, %v55, 0
    %v69 = vsel %vm66, %v58, 0
    %v71 = vsel %vm66, %v63, 0
    %v73 = vsel %vm66, %v65, 0
    %75 = vmatpush.xpose.msra.mxu0 0.0
    %76 = vmatpush.xpose.msra.mxu0 0.0
    %77 = vmatpush.xpose.msra.mxu0 0.0
    %78 = vmatpush.xpose.msra.mxu0 0.0
    %79 = vmatpush.xpose.msra.mxu0 0.0
    %80 = vmatpush.xpose.msra.mxu0 0.0
    %81 = vmatpush.xpose.msra.mxu0 0.0
    %82 = vmatpush.xpose.msra.mxu0 0.0
    %83 = vmatpush.xpose.msra.mxu0 0.0
    %84 = vmatpush.xpose.msra.mxu0 0.0
    %85 = vmatpush.xpose.msra.mxu0 0.0
    %86 = vmatpush.xpose.msra.mxu0 0.0
    %87 = vmatpush.xpose.msra.mxu0 0.0
    %88 = vmatpush.xpose.msra.mxu0 0.0
    %89 = vmatpush.xpose.msra.mxu0 %v73
    %90 = vmatpush.xpose.msra.mxu0 %v71
    %91 = vmatmul.f32.gmra.mxu0 %v67
    %v92 = vpop.f32.mrf.mxu0
    %v93 = vadd.f32 0.0, %v92
    %94 = vmatmul.f32.gmra.mxu0 %v69
    %v95 = vpop.f32.mrf.mxu0
    %v96 = vadd.f32 0.0, %v95
    %97 = vdwg.mxu0
    %v98 = vadd.f32 %v93, %v28
    %100 = vrot.lane.b32.xlu0 %v28, 8
    %v101 = vpop.permute.xlu0 %100
    %v103 = vadd.f32 %v96, %v101
    %vm104 = vcmask 64512
    %v105 = vsel %vm104, %v98, %v103
    %v106 = vsub.f32 0.0, %v105
    %v107 = vmul.f32 %v106, 1.442695
    %v108 = vpow.pop %v107
    %v109 = vadd.f32 %v108, 1.0
    %v110 = vrcp.pop %v109
    %v111 = vmul.f32 %v109, %v110
    %v112 = vsub.f32 1.0, %v111
    %v113 = vmul.f32 %v110, %v112
    %v114 = vadd.f32 %v110, %v113
    %vm115 = vweird.f32 %v109
    %vm116 = vweird.f32 %v110
    %vm117 = vmor %vm115, %vm116
    %v118 = vsel %vm117, %v110, %v114
    %v119 = vand.u32 2147483647, %v109
    %vm120 = vcmp.eq.f32.partialorder %v119, 8.507059e+37
    %v121 = vand.u32 %v109, 2147483648
    %v122 = vor.u32 1.1754944e-38, %v121
    %v123 = vsel %vm120, %v122, %v118
    %v124 = vmul.f32 1.0, %v123
    %v126 = vsel %vm104, %v29, 0
    %128 = vmatpush.msra.mxu0 0.0
    %129 = vmatpush.msra.mxu0 0.0
    %130 = vmatpush.msra.mxu0 0.0
    %131 = vmatpush.msra.mxu0 0.0
    %132 = vmatpush.msra.mxu0 0.0
    %133 = vmatpush.msra.mxu0 0.0
    %134 = vmatpush.msra.mxu0 0.0
    %135 = vmatpush.msra.mxu0 0.0
    %136 = vmatpush.msra.mxu0 0.0
    %137 = vmatpush.msra.mxu0 0.0
    %138 = vmatpush.msra.mxu0 0.0
    %139 = vmatpush.msra.mxu0 0.0
    %140 = vmatpush.msra.mxu0 0.0
    %141 = vmatpush.msra.mxu0 0.0
    %142 = vmatpush.msra.mxu0 0.0
    %143 = vmatpush.msra.mxu0 %v124
    %144 = vmatmul.f32.gmra.mxu0 %v126
    %v145 = vpop.f32.mrf.mxu0
    %v146 = vadd.f32 0.0, %v145
    %147 = vdwg.mxu0
    %v148 = vsel %vm66, %v146, -inf
    %v149 = vrot.slane %v148, 4
    %v150 = vmax.f32 %v148, %v149
    %v151 = vrot.slane %v150, 2
    %v152 = vmax.f32 %v150, %v151
    %v153 = vrot.slane %v152, 1
    %v154 = vmax.f32 %v152, %v153
    %v155 = vsub.f32 %v146, %v154
    %v156 = vmul.f32 %v155, 1.442695
    %v157 = vpow.pop %v156
    %v158 = vsel %vm66, %v157, 0.0
    %v159 = vrot.slane %v158, 4
    %v160 = vadd.f32 %v158, %v159
    %v161 = vrot.slane %v160, 2
    %v162 = vadd.f32 %v160, %v161
    %v163 = vrot.slane %v162, 1
    %v164 = vadd.f32 %v162, %v163
    %v165 = vrcp.pop %v164
    %v166 = vmul.f32 %v164, %v165
    %v167 = vsub.f32 1.0, %v166
    %v168 = vmul.f32 %v165, %v167
    %v169 = vadd.f32 %v165, %v168
    %vm170 = vweird.f32 %v164
    %vm171 = vweird.f32 %v165
    %vm172 = vmor %vm170, %vm171
    %v173 = vsel %vm172, %v165, %v169
    %v174 = vand.u32 2147483647, %v164
    %vm175 = vcmp.eq.f32.partialorder %v174, 8.507059e+37
    %v176 = vand.u32 %v164, 2147483648
    %v177 = vor.u32 1.1754944e-38, %v176
    %v178 = vsel %vm175, %v177, %v173
    %v179 = vmul.f32 %v157, %v178
    %180 = vst.msk [vmem:[#allocation2] sm:$0xff] %vm104, %v179
    %182 = vrot.lane.b32.xlu0 %v179, 120
    %v183 = vpop.permute.xlu0 %182
    %s185 = scalar_lea.vmem [#allocation2], 8
    %186 = vst.msk [vmem:[%s185] sm:$0xff] %vm104, %v183
    // Predicated region
    $region18: #{tpu_custom_call.1} parent=1 // pred_check
      _
    $region19: #{tpu_custom_call.1} parent=1 // pred_check_branch
      %188 = sbr.rel (0) target = $region21
    $region20: #{tpu_custom_call.1} parent=1 // pred_region
      %190 = vsyncadd [#allocation3], 0
      %s191 = sshll.u32 [#allocation2], 4
      %s192 = int_to_ptr.vmem [resolvable:$true] %s191
      %s193 = sshll.u32 %s4, 4
      %s194 = int_to_ptr.hbm [resolvable:$true] %s193
      %199 = dma.vmem_to_hbm [thread:$0]  %s192, 256, %s194, [#allocation3], 128, 128, 8
    $region21: #{tpu_custom_call.1} parent=1 // pred_fallthru
      _
    // Predicated region
    $region22: #{tpu_custom_call.1} parent=1 // pred_check
      _
    $region23: #{tpu_custom_call.1} parent=1 // pred_check_branch
      %201 = sbr.rel (0) target = $region25
    $region24: #{tpu_custom_call.1} parent=1 // pred_region
      %203 = dma.done [#allocation3], 256
    $region25: #{tpu_custom_call.1} parent=1 // pred_fallthru
      _
    %204 = vsyncpa [#allocation3], 1

</llo_original>
